<compile_context>
chip_gen: v5e
topology: v5e:2x2
jax: 0.10.0
libtpu: 0.0.40
codegen_flags: <defaults>
</compile_context>

<pallas_src>
import jax
import jax.numpy as jnp
from jax.experimental import pallas as pl
from jax.experimental.pallas import tpu as pltpu


def _decoder_kernel(x_ref, w_ref, b_ref, o_ref):
    # x_ref: (nb, C, HW)   w_ref: (C, n_classes) (already scaled by 1/HW)
    # b_ref: (1, n_classes) f32
    # Global average pool == lane-axis sum (f32 accumulation), scale folded
    # into the weight.
    pooled = jnp.sum(x_ref[...], axis=-1, dtype=jnp.float32)        # (nb, C)
    logits = jnp.dot(pooled.astype(w_ref.dtype), w_ref[...],
                     preferred_element_type=jnp.float32)            # MXU, f32 acc
    o_ref[...] = (logits + b_ref[...]).astype(o_ref.dtype)


def _vmem_capacity_bytes():
    try:
        return int(pltpu.get_tpu_info().vmem_capacity_bytes)
    except Exception:
        return 64 * 1024 * 1024  # conservative (v7x per-TensorCore)


def _pick_batch_tile(n, c, hw, itemsize, x_budget_bytes):
    """Largest batch tile whose double-buffered (padded) x tile fits the budget."""
    if n <= 8:
        return n
    # VMEM layout pads the last dim to 128 lanes and the 2nd-last to 8 sublanes.
    hw_pad = max(128, pl.cdiv(hw, 128) * 128)
    c_pad = max(8, pl.cdiv(c, 8) * 8)
    per_row = c_pad * hw_pad * itemsize
    max_rows = max(8, x_budget_bytes // (2 * per_row))   # x2: double buffering
    # Megacore (v7x): guarantee >= 2 grid steps when n allows it.
    half = ((pl.cdiv(n, 2) + 7) // 8) * 8
    nb = min(max_rows, half, 1024)
    nb = max(8, (nb // 8) * 8)                           # sublane-aligned blocks
    return min(nb, n)


def resnet_decoder(x_nchw, weight, bias):
    """x_nchw: (N, C, H, W); weight: (n_classes, C); bias: (n_classes,)."""
    n, c, h, w = x_nchw.shape
    n_classes = weight.shape[0]
    hw = h * w

    # Free reshape (NCHW is contiguous): (N, C, HW). HW sits on the lane axis
    # and is reduced in-kernel; no extra HBM pass over x.
    x_flat = x_nchw.reshape(n, c, hw)

    # Pre-transposed weight with 1/HW folded in (computed once, in f32, then
    # cast back to the weight dtype). Bias pre-cast to f32.
    w_t = (jnp.transpose(weight).astype(jnp.float32) * (1.0 / hw)).astype(weight.dtype)
    bias2d = bias.reshape(1, n_classes).astype(jnp.float32)

    # --- VMEM budgeting (generation-aware) -------------------------------
    vmem_cap = _vmem_capacity_bytes()
    vmem_limit = int(min(vmem_cap * 7 // 8, 100 * 1024 * 1024))
    w_bytes = c * n_classes * w_t.dtype.itemsize
    # Reserve: double-buffered W^T + bias + output blocks + small temps/slack.
    reserve = 2 * w_bytes + 6 * 1024 * 1024
    x_budget = max(8 * 1024 * 1024, vmem_limit - reserve)

    nb = _pick_batch_tile(n, c, hw, x_flat.dtype.itemsize, x_budget)
    grid = (pl.cdiv(n, nb),)

    itemsize = x_flat.dtype.itemsize
    cost = pl.CostEstimate(
        flops=int(n * c * hw + 2 * n * c * n_classes),
        bytes_accessed=int(n * c * hw * itemsize
                           + c * n_classes * w_t.dtype.itemsize
                           + n_classes * 4
                           + n * n_classes * itemsize),
        transcendentals=0,
    )

    out = pl.pallas_call(
        _decoder_kernel,
        out_shape=jax.ShapeDtypeStruct((n, n_classes), x_nchw.dtype),
        grid_spec=pltpu.PrefetchScalarGridSpec(
            num_scalar_prefetch=0,
            grid=grid,
            in_specs=[
                pl.BlockSpec((nb, c, hw), lambda i: (i, 0, 0)),       # x tile
                pl.BlockSpec((c, n_classes), lambda i: (0, 0)),       # resident W^T
                pl.BlockSpec((1, n_classes), lambda i: (0, 0)),       # resident bias
            ],
            out_specs=pl.BlockSpec((nb, n_classes), lambda i: (i, 0)),
        ),
        compiler_params=pltpu.CompilerParams(
            dimension_semantics=("parallel",),
            vmem_limit_bytes=vmem_limit,
        ),
        cost_estimate=cost,
    )(x_flat, w_t, bias2d)

    return out


if __name__ == "__main__":
    # Small shapes consistent with the module: N=2, C=in_data=4, H=W=16, n_classes=8
    N, C, H, W = 2, 4, 16, 16
    N_CLASSES = 8

    key = jax.random.PRNGKey(0)
    kx, kw, kb = jax.random.split(key, 3)

    x = jax.random.normal(kx, (N, C, H, W), dtype=jnp.float32)
    bound = 1.0 / (C ** 0.5)
    weight = jax.random.uniform(kw, (N_CLASSES, C), minval=-bound, maxval=bound,
                                dtype=jnp.float32)
    bias = jax.random.uniform(kb, (N_CLASSES,), minval=-bound, maxval=bound,
                              dtype=jnp.float32)

    out = resnet_decoder(x, weight, bias)
    out = jax.block_until_ready(out)

    # Pure-JAX reference (same semantics as the PyTorch forward).
    ref = jnp.mean(x, axis=(2, 3)) @ weight.T + bias
    assert out.shape == (N, N_CLASSES)
    assert jnp.allclose(out, ref, atol=1e-5, rtol=1e-5)

    print("KERNEL_OK")
</pallas_src>

<mosaic_0001>
module attributes {stable_mosaic.version = 11 : i64} {
  func.func @_decoder_kernel(%arg0: i32, %arg1: memref<2x4x256xf32, #tpu.memory_space<vmem>>, %arg2: memref<4x8xf32, #tpu.memory_space<vmem>>, %arg3: memref<1x8xf32, #tpu.memory_space<vmem>>, %arg4: memref<2x8xf32, #tpu.memory_space<vmem>>) attributes {dimension_semantics = [#tpu.dimension_semantics<parallel>], iteration_bounds = array<i64: 1>, scalar_prefetch = 0 : i64, scratch_operands = 0 : i64, tpu.core_type = #tpu.core_type<tc>, window_params = [{transform_indices = @transform_0, window_bounds = array<i64: 2, 4, 256>}, {pipeline_mode = #tpu.pipeline_mode<synchronous>, transform_indices = @transform_1, window_bounds = array<i64: 4, 8>}, {pipeline_mode = #tpu.pipeline_mode<synchronous>, transform_indices = @transform_2, window_bounds = array<i64: 1, 8>}, {transform_indices = @transform_3, window_bounds = array<i64: 2, 8>}]} {
    %c0 = arith.constant 0 : index
    %c0_0 = arith.constant 0 : index
    %c0_1 = arith.constant 0 : index
    %0 = vector.load %arg1[%c0, %c0_0, %c0_1] : memref<2x4x256xf32, #tpu.memory_space<vmem>>, vector<2x4x256xf32>
    %cst = arith.constant dense<0.000000e+00> : vector<2x4xf32>
    %1 = vector.multi_reduction <add>, %0, %cst [2] : vector<2x4x256xf32> to vector<2x4xf32>
    %c0_2 = arith.constant 0 : index
    %c0_3 = arith.constant 0 : index
    %2 = vector.load %arg2[%c0_2, %c0_3] : memref<4x8xf32, #tpu.memory_space<vmem>>, vector<4x8xf32>
    %cst_4 = arith.constant dense<0.000000e+00> : vector<2x8xf32>
    %3 = tpu.matmul %1, %2, %cst_4 {dimension_numbers = #tpu.dot_dimension_numbers<[1], [0], [0], [1], [0, 0, 1, 1], [], []>} : vector<2x4xf32>, vector<4x8xf32>, vector<2x8xf32> -> vector<2x8xf32>
    %c0_5 = arith.constant 0 : index
    %c0_6 = arith.constant 0 : index
    %4 = vector.load %arg3[%c0_5, %c0_6] : memref<1x8xf32, #tpu.memory_space<vmem>>, vector<1x8xf32>
    %5 = vector.broadcast %4 : vector<1x8xf32> to vector<2x8xf32>
    %6 = arith.addf %3, %5 : vector<2x8xf32>
    %c0_7 = arith.constant 0 : index
    %c0_8 = arith.constant 0 : index
    %7 = vector.load %arg4[%c0_7, %c0_8] : memref<2x8xf32, #tpu.memory_space<vmem>>, vector<2x8xf32>
    tpu.vector_store %arg4[%c0_7, %c0_8], %6 {strides = array<i32>} : memref<2x8xf32, #tpu.memory_space<vmem>>, vector<2x8xf32>,
    return
  }
  func.func @transform_0(%arg0: i32) -> (i32, i32, i32) {
    %c0_i32 = arith.constant 0 : i32
    %c0_i32_0 = arith.constant 0 : i32
    %c0_i32_1 = arith.constant 0 : i32
    return %arg0, %c0_i32, %c0_i32_0 : i32, i32, i32
  }
  func.func @transform_1(%arg0: i32) -> (i32, i32) {
    %c0_i32 = arith.constant 0 : i32
    %c0_i32_0 = arith.constant 0 : i32
    %c0_i32_1 = arith.constant 0 : i32
    return %c0_i32, %c0_i32_0 : i32, i32
  }
  func.func @transform_2(%arg0: i32) -> (i32, i32) {
    %c0_i32 = arith.constant 0 : i32
    %c0_i32_0 = arith.constant 0 : i32
    %c0_i32_1 = arith.constant 0 : i32
    return %c0_i32, %c0_i32_0 : i32, i32
  }
  func.func @transform_3(%arg0: i32) -> (i32, i32) {
    %c0_i32 = arith.constant 0 : i32
    %c0_i32_0 = arith.constant 0 : i32
    return %arg0, %c0_i32 : i32, i32
  }
}

</mosaic_0001>

<llo_original>
// kernel: tpu_custom_call.1
$region0: #{tpu_custom_call.1}
  #allocation0 [shape = 'u32[]', space=smem, size = 0x4, offset = 0x4, fixed_abs, tag = 'smem constant byte address 0x4 - core index']
  #allocation1 [shape = 'u32[72,128]{1,0:T(1,128)}', space=vmem, size = 0x9000, scoped, tag = 'internal scratch']
  %s0 = inlined_call_operand.hbm [shape: f32[2,4,256], index: 0, kind: input, shape index: {}]
  %s1 = inlined_call_operand.hbm [shape: f32[4,8], index: 1, kind: input, shape index: {}]
  %s2 = inlined_call_operand.vmem [shape: f32[1,8], index: 2, kind: input, shape index: {}]
  %s3 = inlined_call_operand.hbm [shape: f32[2,8], index: 3, kind: output, shape index: {}]
  %s4 = sld [smem:[#allocation0]]
  $region30: #{tpu_custom_call.1} parent=0
    _
  %s6 = ssub.s32 1, %s4
  %s7 = scalar_select 0, %s6, %s4
  $region1: #{tpu_custom_call.1} parent=0
    #allocation2 [shape = 'u8[8192]{0}', space=vmem, size = 0x2000, scoped, tag = 'input window, operand 0, single buffered']
    #allocation3 [shape = 's32[1]{0}', space=sflag, size = 0x4, scoped, tag = 'scoped memory for tpu_custom_call.1']
    #allocation4 [shape = 's32[1]{0}', space=sflag, size = 0x4, scoped, tag = 'scoped memory for tpu_custom_call.1']
    #allocation5 [shape = 'u8[2048]{0}', space=vmem, size = 0x800, scoped, tag = 'input window, operand 1, single buffered']
    #allocation6 [shape = 's32[1]{0}', space=sflag, size = 0x4, scoped, tag = 'scoped memory for tpu_custom_call.1']
    #allocation7 [shape = 'u8[1024]{0}', space=vmem, size = 0x400, scoped, tag = 'output window, operand 0, single buffered']
    %8 = vsyncpa [#allocation3], 0
    %9 = vsyncpa [#allocation6], 0
    %10 = vsyncpa [#allocation4], 0
    // Predicated region
    $region2: #{tpu_custom_call.1} parent=1 // pred_check
      _
    $region3: #{tpu_custom_call.1} parent=1 // pred_check_branch
      %12 = sbr.rel (0) target = $region5
    $region4: #{tpu_custom_call.1} parent=1 // pred_region
      %14 = vsyncadd [#allocation3], 0
      %s15 = sshll.u32 %s0, 4
      %s16 = int_to_ptr.hbm [resolvable:$true] %s15
      %s17 = sshll.u32 [#allocation2], 4
      %s18 = int_to_ptr.vmem [resolvable:$true] %s17
      %23 = dma.hbm_to_vmem [thread:$0]  %s16, 256, %s18, [#allocation3], 128, 128, 8
    $region5: #{tpu_custom_call.1} parent=1 // pred_fallthru
      _
    // Predicated region
    $region6: #{tpu_custom_call.1} parent=1 // pred_check
      _
    $region7: #{tpu_custom_call.1} parent=1 // pred_check_branch
      %25 = sbr.rel (0) target = $region9
    $region8: #{tpu_custom_call.1} parent=1 // pred_region
      %27 = vsyncadd [#allocation6], 0
      %s29 = sshll.u32 %s1, 4
      %s30 = int_to_ptr.hbm [resolvable:$true] %s29
      %s31 = sshll.u32 [#allocation5], 4
      %s32 = int_to_ptr.vmem [resolvable:$true] %s31
      %34 = dma.hbm_to_vmem [thread:$0]  %s30, 64, %s32, [#allocation6]
    $region9: #{tpu_custom_call.1} parent=1 // pred_fallthru
      _
    // Predicated region
    $region10: #{tpu_custom_call.1} parent=1 // pred_check
      _
    $region11: #{tpu_custom_call.1} parent=1 // pred_check_branch
      %36 = sbr.rel (0) target = $region13
    $region12: #{tpu_custom_call.1} parent=1 // pred_region
      _
    $region13: #{tpu_custom_call.1} parent=1 // pred_fallthru
      _
    // Predicated region
    $region14: #{tpu_custom_call.1} parent=1 // pred_check
      _
    $region15: #{tpu_custom_call.1} parent=1 // pred_check_branch
      %38 = sbr.rel (0) target = $region17
    $region16: #{tpu_custom_call.1} parent=1 // pred_region
      %40 = dma.done [#allocation3], 256
    $region17: #{tpu_custom_call.1} parent=1 // pred_fallthru
      _
    // Predicated region
    $region18: #{tpu_custom_call.1} parent=1 // pred_check
      _
    $region19: #{tpu_custom_call.1} parent=1 // pred_check_branch
      %42 = sbr.rel (0) target = $region21
    $region20: #{tpu_custom_call.1} parent=1 // pred_region
      %44 = dma.done [#allocation6], 64
    $region21: #{tpu_custom_call.1} parent=1 // pred_fallthru
      _
    %v45 = vld [vmem:[#allocation2] sm:$0xff]
    %v46 = vld [vmem:[#allocation2 + $0x8] sm:$0xff]
    %49 = vst [vmem:[#allocation1] ss:$2 sm:$0xff] %v45
    %v50 = vld.sshfl [vmem:[#allocation1] sm:$0xff pattern:$0x75316420]
    %v51 = vld.sshfl [vmem:[#allocation1 + $0x8] sm:$0xff pattern:$0x75316420]
    %s52 = scalar_lea.vmem [#allocation1], 16
    %53 = vst [vmem:[%s52] ss:$2 sm:$0xff] %v46
    %v54 = vld.sshfl [vmem:[#allocation1 + $0x10] sm:$0xff pattern:$0x75316420]
    %v55 = vld.sshfl [vmem:[#allocation1 + $0x18] sm:$0xff pattern:$0x75316420]
    %vm60 = vcmask 1043456
    %v61 = vsel %vm60, %v50, 0.0
    %v62 = vsel %vm60, %v51, 0.0
    %v63 = vadd.f32 %v61, %v62
    %64 = vadd.xlane.f32.xlu0 %v63
    %v65 = vpop.xlane.xlu0 %64
    %v66 = vsel %vm60, %v54, 0.0
    %v67 = vsel %vm60, %v55, 0.0
    %v68 = vadd.f32 %v66, %v67
    %69 = vadd.xlane.f32.xlu0 %v68
    %v70 = vpop.xlane.xlu0 %69
    %v71 = vld [vmem:[#allocation5] sm:$0xf]
    %v72 = vld [vmem:[%s2] sm:$0x1]
    %v74 = vperm.slane %v72, 0
    %v78 = vlaneseq
    %v79 = vand.u32 %v78, 127
    %v80 = vperm.slane %v65, %v79
    %v81 = vperm.slane %v70, %v79
    %vm82 = vcmask 1041409
    %v83 = vsel %vm82, %v81, %v80
    %vm84 = vcmask 31744
    %v85 = vsel %vm84, %v83, 0
    %v88 = vsel %vm60, %v71, 0
    %90 = vmatpush.msra.mxu0 0.0
    %91 = vmatpush.msra.mxu0 0.0
    %92 = vmatpush.msra.mxu0 0.0
    %93 = vmatpush.msra.mxu0 0.0
    %94 = vmatpush.msra.mxu0 0.0
    %95 = vmatpush.msra.mxu0 0.0
    %96 = vmatpush.msra.mxu0 0.0
    %97 = vmatpush.msra.mxu0 0.0
    %98 = vmatpush.msra.mxu0 0.0
    %99 = vmatpush.msra.mxu0 0.0
    %100 = vmatpush.msra.mxu0 0.0
    %101 = vmatpush.msra.mxu0 0.0
    %102 = vmatpush.msra.mxu0 0.0
    %103 = vmatpush.msra.mxu0 0.0
    %104 = vmatpush.msra.mxu0 0.0
    %105 = vmatpush.msra.mxu0 %v88
    %106 = vmatmul.f32.gmra.mxu0 %v85
    %v107 = vpop.f32.mrf.mxu0
    %v108 = vadd.f32 %v74, %v107
    %109 = vdwg.mxu0
    %vm110 = vcmask 58368
    %111 = vst.msk [vmem:[#allocation7] sm:$0x3] %vm110, %v108
    // Predicated region
    $region22: #{tpu_custom_call.1} parent=1 // pred_check
      _
    $region23: #{tpu_custom_call.1} parent=1 // pred_check_branch
      %113 = sbr.rel (0) target = $region25
    $region24: #{tpu_custom_call.1} parent=1 // pred_region
      %115 = vsyncadd [#allocation4], 0
      %s117 = sshll.u32 [#allocation7], 4
      %s118 = int_to_ptr.vmem [resolvable:$true] %s117
      %s119 = sshll.u32 %s3, 4
      %s120 = int_to_ptr.hbm [resolvable:$true] %s119
      %122 = dma.vmem_to_hbm [thread:$0]  %s118, 32, %s120, [#allocation4]
    $region25: #{tpu_custom_call.1} parent=1 // pred_fallthru
      _
    // Predicated region
    $region26: #{tpu_custom_call.1} parent=1 // pred_check
      _
    $region27: #{tpu_custom_call.1} parent=1 // pred_check_branch
      %124 = sbr.rel (0) target = $region29
    $region28: #{tpu_custom_call.1} parent=1 // pred_region
      %126 = dma.done [#allocation4], 32
    $region29: #{tpu_custom_call.1} parent=1 // pred_fallthru
      _
    %127 = vsyncpa [#allocation3], 1
    %128 = vsyncpa [#allocation6], 1
    %129 = vsyncpa [#allocation4], 1

</llo_original>
